<compile_context>
chip_gen: v6e
topology: v6e:2x2x1
jax: 0.10.0
libtpu: 0.0.40
codegen_flags: <defaults>
</compile_context>

<pallas_src>
import jax
import jax.numpy as jnp
from jax import lax
from jax.experimental import pallas as pl
from jax.experimental.pallas import tpu as pltpu

NUM_ACTIONS = 74

# lane-dense (zero padded) dimensions
IN_P = 128     # 54 + 54 + 10 = 118 -> 128
H1_P = 256     # 200 -> 256
H2_P = 128     # 125 -> 128
H3_P = 128     # 80  -> 128
OUT_P = 128    # 74  -> 128

SUBCHUNK = 512  # rows per inner kernel step (bounds live f32 intermediates)


def _round_up(x, m):
    return (x + m - 1) // m * m


def _cdiv(a, b):
    return -(-a // b)


def _device_config():
    """Generation-aware batch-tile size and scoped-VMEM budget."""
    try:
        kind = jax.devices()[0].device_kind.lower()
    except Exception:
        kind = ""
    if "v7" in kind:
        # v7x: 64 MiB physical VMEM per TC -> modest tile; 2 TCs want >=2 tiles.
        return dict(max_tb=2048, vmem_bytes=32 * 1024 * 1024)
    # v5e / v6e: 128 MiB VMEM, lower HBM BW -> big tiles amortize per-step cost.
    return dict(max_tb=8192, vmem_bytes=64 * 1024 * 1024)


# --------------------------------------------------------------------------- #
# kernel
# --------------------------------------------------------------------------- #
def macao_kernel(x_ref, w1_ref, b1_ref, w2_ref, b2_ref,
                 w3_ref, b3_ref, w4_ref, b4_ref, out_ref):
    f32 = jnp.float32
    tb = x_ref.shape[0]                     # static block rows
    n_full = tb // SUBCHUNK
    tail = tb - n_full * SUBCHUNK           # static, multiple of 16

    w1 = w1_ref[...]; b1 = b1_ref[...]
    w2 = w2_ref[...]; b2 = b2_ref[...]
    w3 = w3_ref[...]; b3 = b3_ref[...]
    w4 = w4_ref[...]; b4 = b4_ref[...]
    cdt = w1.dtype                          # MXU feed dtype (bf16)

    def run_rows(r0, rows):
        x = x_ref[pl.ds(r0, rows), :]
        # hidden 1: fused hand/pot proj + hidden-1, (rows,128)@(128,256)
        h1 = jnp.dot(x, w1, preferred_element_type=f32) + b1
        h1 = jnp.maximum(h1, 0.0).astype(cdt)
        # hidden 2: (rows,256)@(256,128)
        h2 = jnp.dot(h1, w2, preferred_element_type=f32) + b2
        h2 = jnp.maximum(h2, 0.0).astype(cdt)
        # hidden 3: (rows,128)@(128,128)
        h3 = jnp.dot(h2, w3, preferred_element_type=f32) + b3
        h3 = jnp.maximum(h3, 0.0).astype(cdt)
        # output:   (rows,128)@(128,128) -> lane-dense bf16 store
        o = jnp.dot(h3, w4, preferred_element_type=f32) + b4
        out_ref[pl.ds(r0, rows), :] = o.astype(out_ref.dtype)

    if n_full > 0:
        def body(c, carry):
            run_rows(pl.multiple_of(c * SUBCHUNK, SUBCHUNK), SUBCHUNK)
            return carry
        lax.fori_loop(0, n_full, body, 0, unroll=True)
    if tail > 0:
        run_rows(n_full * SUBCHUNK, tail)


# --------------------------------------------------------------------------- #
# parameter init (mimics PyTorch nn.Linear default init) and fusion / padding
# --------------------------------------------------------------------------- #
def init_params(key):
    def linear(k, fan_in, fan_out):
        kw, kb = jax.random.split(k)
        bound = 1.0 / jnp.sqrt(fan_in)
        w = jax.random.uniform(kw, (fan_in, fan_out), jnp.float32, -bound, bound)
        b = jax.random.uniform(kb, (1, fan_out), jnp.float32, -bound, bound)
        return w, b

    keys = jax.random.split(key, 6)
    wh, bh = linear(keys[0], 54, 30)            # hand_proj
    wp, bp = linear(keys[1], 54, 30)            # pot_proj
    w1, b1 = linear(keys[2], 70, 200)           # hidden 1
    w2, b2 = linear(keys[3], 200, 125)          # hidden 2
    w3, b3 = linear(keys[4], 125, 80)           # hidden 3
    w4, b4 = linear(keys[5], 80, NUM_ACTIONS)   # output
    return dict(wh=wh, bh=bh, wp=wp, bp=bp,
                w1=w1, b1=b1, w2=w2, b2=b2,
                w3=w3, b3=b3, w4=w4, b4=b4)


def prepare_fused_params(params, compute_dtype=jnp.bfloat16):
    """Fold hand/pot projections into hidden-1 and zero-pad to lane-dense shapes."""
    f32 = jnp.float32

    def pad2(w, rows, cols):
        return jnp.pad(w, ((0, rows - w.shape[0]), (0, cols - w.shape[1])))

    wh, bh = params["wh"].astype(f32), params["bh"].astype(f32)
    wp, bp = params["wp"].astype(f32), params["bp"].astype(f32)
    w1, b1 = params["w1"].astype(f32), params["b1"].astype(f32)
    w1a, w1b, w1c = w1[:30], w1[30:60], w1[60:]

    # exact algebraic fusion (no nonlinearity between projections and hidden-1)
    w_big = jnp.concatenate([wh @ w1a, wp @ w1b, w1c], axis=0)   # (118, 200)
    b_big = bh @ w1a + bp @ w1b + b1                             # (1, 200)

    return dict(
        w1=pad2(w_big, IN_P, H1_P).astype(compute_dtype),
        b1=pad2(b_big, 1, H1_P),
        w2=pad2(params["w2"].astype(f32), H1_P, H2_P).astype(compute_dtype),
        b2=pad2(params["b2"].astype(f32), 1, H2_P),
        w3=pad2(params["w3"].astype(f32), H2_P, H3_P).astype(compute_dtype),
        b3=pad2(params["b3"].astype(f32), 1, H3_P),
        w4=pad2(params["w4"].astype(f32), H3_P, OUT_P).astype(compute_dtype),
        b4=pad2(params["b4"].astype(f32), 1, OUT_P),
    )


# --------------------------------------------------------------------------- #
# wrapper
# --------------------------------------------------------------------------- #
def macao_forward(fused, hand, card_pot, drawing_contest, turns_contest,
                  player_turns, adv_turns, adv_len, suites, pass_flag,
                  unpad=True):
    cfg = _device_config()
    compute_dtype = fused["w1"].dtype

    B = hand.shape[0]
    comps = [hand, card_pot, drawing_contest, turns_contest, player_turns,
             adv_turns, adv_len, suites, pass_flag]
    feat = sum(int(c.shape[1]) for c in comps)            # 118
    # cast each piece to bf16 before the concat and fold the lane pad into it
    comps = [c.astype(compute_dtype) for c in comps]
    comps.append(jnp.zeros((B, IN_P - feat), compute_dtype))
    x = jnp.concatenate(comps, axis=1)                    # (B, 128) bf16

    # Batch tiling: choose n_tiles first, then round the tile only to a 16-row
    # granule so worst-case zero-row padding is <=15 rows per tile.  Force >=2
    # tiles for B >= 512 so both v7x TensorCores get work ("parallel" axis).
    max_tb = cfg["max_tb"]
    n_tiles = max(1, _cdiv(B, max_tb))
    if n_tiles == 1 and B >= 512:
        n_tiles = 2
    tb = _round_up(_cdiv(B, n_tiles), 16)
    b_padded = tb * n_tiles

    x = jnp.pad(x, ((0, b_padded - B), (0, 0)))

    def w_spec(shape):
        return pl.BlockSpec(shape, lambda i: (0, 0))      # resident weights

    in_specs = [
        pl.BlockSpec((tb, IN_P), lambda i: (i, 0)),       # batch-tiled activations
        w_spec((IN_P, H1_P)), w_spec((1, H1_P)),
        w_spec((H1_P, H2_P)), w_spec((1, H2_P)),
        w_spec((H2_P, H3_P)), w_spec((1, H3_P)),
        w_spec((H3_P, OUT_P)), w_spec((1, OUT_P)),
    ]
    out_spec = pl.BlockSpec((tb, OUT_P), lambda i: (i, 0))

    itemsize = jnp.dtype(compute_dtype).itemsize
    flops = 2 * b_padded * (IN_P * H1_P + H1_P * H2_P + H2_P * H3_P + H3_P * OUT_P)
    bytes_accessed = int(b_padded * (IN_P + OUT_P) * itemsize
                         + sum(int(v.size) * v.dtype.itemsize
                               for v in fused.values()))

    out = pl.pallas_call(
        macao_kernel,
        out_shape=jax.ShapeDtypeStruct((b_padded, OUT_P), compute_dtype),
        grid=(n_tiles,),
        in_specs=in_specs,
        out_specs=out_spec,
        compiler_params=pltpu.CompilerParams(
            dimension_semantics=("parallel",),
            vmem_limit_bytes=cfg["vmem_bytes"]),
        cost_estimate=pl.CostEstimate(flops=flops, transcendentals=0,
                                      bytes_accessed=bytes_accessed),
    )(x, fused["w1"], fused["b1"], fused["w2"], fused["b2"],
      fused["w3"], fused["b3"], fused["w4"], fused["b4"])

    if unpad:
        return out[:B, :NUM_ACTIONS]
    return out  # padded (b_padded, 128) bf16 logits, lanes [74:] are zero


# --------------------------------------------------------------------------- #
# pure-JAX reference (f32, unfused) for correctness checking
# --------------------------------------------------------------------------- #
def reference_forward(params, hand, card_pot, extras):
    hand_proj = hand @ params["wh"] + params["bh"]
    card_proj = card_pot @ params["wp"] + params["bp"]
    feats = jnp.concatenate([hand_proj, card_proj, extras], axis=1)
    h = jnp.maximum(feats @ params["w1"] + params["b1"], 0.0)
    h = jnp.maximum(h @ params["w2"] + params["b2"], 0.0)
    h = jnp.maximum(h @ params["w3"] + params["b3"], 0.0)
    return h @ params["w4"] + params["b4"]


def _make_inputs(key, B):
    ks = jax.random.split(key, 9)
    hand = jax.random.bernoulli(ks[0], 0.2, (B, 54)).astype(jnp.float32)
    card_pot = jax.random.bernoulli(ks[1], 0.05, (B, 54)).astype(jnp.float32)
    drawing_contest = jax.random.uniform(ks[2], (B, 1), jnp.float32)
    turns_contest = jax.random.uniform(ks[3], (B, 1), jnp.float32)
    player_turns = jax.random.uniform(ks[4], (B, 1), jnp.float32)
    adv_turns = jax.random.uniform(ks[5], (B, 1), jnp.float32)
    adv_len = jax.random.uniform(ks[6], (B, 1), jnp.float32)
    suites = jax.random.bernoulli(ks[7], 0.25, (B, 4)).astype(jnp.float32)
    pass_flag = jax.random.bernoulli(ks[8], 0.5, (B, 1)).astype(jnp.float32)
    return (hand, card_pot, drawing_contest, turns_contest, player_turns,
            adv_turns, adv_len, suites, pass_flag)


if __name__ == "__main__":
    key = jax.random.PRNGKey(0)
    pkey, dkey1, dkey2 = jax.random.split(key, 3)
    params = init_params(pkey)
    fused = prepare_fused_params(params, compute_dtype=jnp.bfloat16)

    fwd = jax.jit(macao_forward)

    def check(dkey, B):
        inputs = _make_inputs(dkey, B)
        out = jax.block_until_ready(fwd(fused, *inputs))
        extras = jnp.concatenate(inputs[2:], axis=1)
        ref = reference_forward(params, inputs[0], inputs[1], extras)
        assert out.shape == (B, NUM_ACTIONS), out.shape
        assert out.dtype == jnp.bfloat16, out.dtype
        ok = jnp.allclose(out.astype(jnp.float32), ref, atol=1e-1, rtol=1e-1)
        assert ok, float(jnp.max(jnp.abs(out.astype(jnp.float32) - ref)))

    # small batch (single tile, single sub-chunk)
    check(dkey1, 8)
    # larger batch: exercises multi-tile grid + 512-row sub-chunks + tail chunk
    check(dkey2, 1040)

    print("KERNEL_OK")
</pallas_src>

<mosaic_0001>
module attributes {stable_mosaic.version = 11 : i64} {
  func.func @macao_kernel(%arg0: i32, %arg1: memref<16x128xbf16, #tpu.memory_space<vmem>>, %arg2: memref<128x256xbf16, #tpu.memory_space<vmem>>, %arg3: memref<1x256xf32, #tpu.memory_space<vmem>>, %arg4: memref<256x128xbf16, #tpu.memory_space<vmem>>, %arg5: memref<1x128xf32, #tpu.memory_space<vmem>>, %arg6: memref<128x128xbf16, #tpu.memory_space<vmem>>, %arg7: memref<1x128xf32, #tpu.memory_space<vmem>>, %arg8: memref<128x128xbf16, #tpu.memory_space<vmem>>, %arg9: memref<1x128xf32, #tpu.memory_space<vmem>>, %arg10: memref<16x128xbf16, #tpu.memory_space<vmem>>) attributes {dimension_semantics = [#tpu.dimension_semantics<parallel>], iteration_bounds = array<i64: 1>, scalar_prefetch = 0 : i64, scratch_operands = 0 : i64, tpu.core_type = #tpu.core_type<tc>, window_params = [{transform_indices = @transform_0, window_bounds = array<i64: 16, 128>}, {pipeline_mode = #tpu.pipeline_mode<synchronous>, transform_indices = @transform_1, window_bounds = array<i64: 128, 256>}, {pipeline_mode = #tpu.pipeline_mode<synchronous>, transform_indices = @transform_2, window_bounds = array<i64: 1, 256>}, {pipeline_mode = #tpu.pipeline_mode<synchronous>, transform_indices = @transform_3, window_bounds = array<i64: 256, 128>}, {pipeline_mode = #tpu.pipeline_mode<synchronous>, transform_indices = @transform_4, window_bounds = array<i64: 1, 128>}, {pipeline_mode = #tpu.pipeline_mode<synchronous>, transform_indices = @transform_5, window_bounds = array<i64: 128, 128>}, {pipeline_mode = #tpu.pipeline_mode<synchronous>, transform_indices = @transform_6, window_bounds = array<i64: 1, 128>}, {pipeline_mode = #tpu.pipeline_mode<synchronous>, transform_indices = @transform_7, window_bounds = array<i64: 128, 128>}, {pipeline_mode = #tpu.pipeline_mode<synchronous>, transform_indices = @transform_8, window_bounds = array<i64: 1, 128>}, {transform_indices = @transform_9, window_bounds = array<i64: 16, 128>}]} {
    %c0 = arith.constant 0 : index
    %c0_0 = arith.constant 0 : index
    %0 = vector.load %arg2[%c0, %c0_0] : memref<128x256xbf16, #tpu.memory_space<vmem>>, vector<128x256xbf16>
    %c0_1 = arith.constant 0 : index
    %c0_2 = arith.constant 0 : index
    %1 = vector.load %arg3[%c0_1, %c0_2] : memref<1x256xf32, #tpu.memory_space<vmem>>, vector<1x256xf32>
    %c0_3 = arith.constant 0 : index
    %c0_4 = arith.constant 0 : index
    %2 = vector.load %arg4[%c0_3, %c0_4] : memref<256x128xbf16, #tpu.memory_space<vmem>>, vector<256x128xbf16>
    %c0_5 = arith.constant 0 : index
    %c0_6 = arith.constant 0 : index
    %3 = vector.load %arg5[%c0_5, %c0_6] : memref<1x128xf32, #tpu.memory_space<vmem>>, vector<1x128xf32>
    %c0_7 = arith.constant 0 : index
    %c0_8 = arith.constant 0 : index
    %4 = vector.load %arg6[%c0_7, %c0_8] : memref<128x128xbf16, #tpu.memory_space<vmem>>, vector<128x128xbf16>
    %c0_9 = arith.constant 0 : index
    %c0_10 = arith.constant 0 : index
    %5 = vector.load %arg7[%c0_9, %c0_10] : memref<1x128xf32, #tpu.memory_space<vmem>>, vector<1x128xf32>
    %c0_11 = arith.constant 0 : index
    %c0_12 = arith.constant 0 : index
    %6 = vector.load %arg8[%c0_11, %c0_12] : memref<128x128xbf16, #tpu.memory_space<vmem>>, vector<128x128xbf16>
    %c0_13 = arith.constant 0 : index
    %c0_14 = arith.constant 0 : index
    %7 = vector.load %arg9[%c0_13, %c0_14] : memref<1x128xf32, #tpu.memory_space<vmem>>, vector<1x128xf32>
    %c0_15 = arith.constant 0 : index
    %c0_16 = arith.constant 0 : index
    %8 = vector.load %arg1[%c0_15, %c0_16] : memref<16x128xbf16, #tpu.memory_space<vmem>>, vector<16x128xbf16>
    %cst = arith.constant dense<0.000000e+00> : vector<16x256xf32>
    %9 = tpu.matmul %8, %0, %cst {dimension_numbers = #tpu.dot_dimension_numbers<[1], [0], [0], [1], [0, 0, 1, 1], [], []>} : vector<16x128xbf16>, vector<128x256xbf16>, vector<16x256xf32> -> vector<16x256xf32>
    %10 = vector.broadcast %1 : vector<1x256xf32> to vector<16x256xf32>
    %11 = arith.addf %9, %10 : vector<16x256xf32>
    %cst_17 = arith.constant 0.000000e+00 : f32
    %12 = vector.broadcast %cst_17 : f32 to vector<16x256xf32>
    %13 = arith.maximumf %11, %12 : vector<16x256xf32>
    %14 = arith.truncf %13 : vector<16x256xf32> to vector<16x256xbf16>
    %cst_18 = arith.constant dense<0.000000e+00> : vector<16x128xf32>
    %15 = tpu.matmul %14, %2, %cst_18 {dimension_numbers = #tpu.dot_dimension_numbers<[1], [0], [0], [1], [0, 0, 1, 1], [], []>} : vector<16x256xbf16>, vector<256x128xbf16>, vector<16x128xf32> -> vector<16x128xf32>
    %16 = vector.broadcast %3 : vector<1x128xf32> to vector<16x128xf32>
    %17 = arith.addf %15, %16 : vector<16x128xf32>
    %cst_19 = arith.constant 0.000000e+00 : f32
    %18 = vector.broadcast %cst_19 : f32 to vector<16x128xf32>
    %19 = arith.maximumf %17, %18 : vector<16x128xf32>
    %20 = arith.truncf %19 : vector<16x128xf32> to vector<16x128xbf16>
    %cst_20 = arith.constant dense<0.000000e+00> : vector<16x128xf32>
    %21 = tpu.matmul %20, %4, %cst_20 {dimension_numbers = #tpu.dot_dimension_numbers<[1], [0], [0], [1], [0, 0, 1, 1], [], []>} : vector<16x128xbf16>, vector<128x128xbf16>, vector<16x128xf32> -> vector<16x128xf32>
    %22 = vector.broadcast %5 : vector<1x128xf32> to vector<16x128xf32>
    %23 = arith.addf %21, %22 : vector<16x128xf32>
    %cst_21 = arith.constant 0.000000e+00 : f32
    %24 = vector.broadcast %cst_21 : f32 to vector<16x128xf32>
    %25 = arith.maximumf %23, %24 : vector<16x128xf32>
    %26 = arith.truncf %25 : vector<16x128xf32> to vector<16x128xbf16>
    %cst_22 = arith.constant dense<0.000000e+00> : vector<16x128xf32>
    %27 = tpu.matmul %26, %6, %cst_22 {dimension_numbers = #tpu.dot_dimension_numbers<[1], [0], [0], [1], [0, 0, 1, 1], [], []>} : vector<16x128xbf16>, vector<128x128xbf16>, vector<16x128xf32> -> vector<16x128xf32>
    %28 = vector.broadcast %7 : vector<1x128xf32> to vector<16x128xf32>
    %29 = arith.addf %27, %28 : vector<16x128xf32>
    %30 = arith.truncf %29 : vector<16x128xf32> to vector<16x128xbf16>
    %c0_23 = arith.constant 0 : index
    %c0_24 = arith.constant 0 : index
    %31 = vector.load %arg10[%c0_23, %c0_24] : memref<16x128xbf16, #tpu.memory_space<vmem>>, vector<16x128xbf16>
    tpu.vector_store %arg10[%c0_23, %c0_24], %30 {strides = array<i32>} : memref<16x128xbf16, #tpu.memory_space<vmem>>, vector<16x128xbf16>,
    return
  }
  func.func @transform_0(%arg0: i32) -> (i32, i32) {
    %c0_i32 = arith.constant 0 : i32
    %c0_i32_0 = arith.constant 0 : i32
    return %arg0, %c0_i32 : i32, i32
  }
  func.func @transform_1(%arg0: i32) -> (i32, i32) {
    %c0_i32 = arith.constant 0 : i32
    %c0_i32_0 = arith.constant 0 : i32
    %c0_i32_1 = arith.constant 0 : i32
    return %c0_i32, %c0_i32_0 : i32, i32
  }
  func.func @transform_2(%arg0: i32) -> (i32, i32) {
    %c0_i32 = arith.constant 0 : i32
    %c0_i32_0 = arith.constant 0 : i32
    %c0_i32_1 = arith.constant 0 : i32
    return %c0_i32, %c0_i32_0 : i32, i32
  }
  func.func @transform_3(%arg0: i32) -> (i32, i32) {
    %c0_i32 = arith.constant 0 : i32
    %c0_i32_0 = arith.constant 0 : i32
    %c0_i32_1 = arith.constant 0 : i32
    return %c0_i32, %c0_i32_0 : i32, i32
  }
  func.func @transform_4(%arg0: i32) -> (i32, i32) {
    %c0_i32 = arith.constant 0 : i32
    %c0_i32_0 = arith.constant 0 : i32
    %c0_i32_1 = arith.constant 0 : i32
    return %c0_i32, %c0_i32_0 : i32, i32
  }
  func.func @transform_5(%arg0: i32) -> (i32, i32) {
    %c0_i32 = arith.constant 0 : i32
    %c0_i32_0 = arith.constant 0 : i32
    %c0_i32_1 = arith.constant 0 : i32
    return %c0_i32, %c0_i32_0 : i32, i32
  }
  func.func @transform_6(%arg0: i32) -> (i32, i32) {
    %c0_i32 = arith.constant 0 : i32
    %c0_i32_0 = arith.constant 0 : i32
    %c0_i32_1 = arith.constant 0 : i32
    return %c0_i32, %c0_i32_0 : i32, i32
  }
  func.func @transform_7(%arg0: i32) -> (i32, i32) {
    %c0_i32 = arith.constant 0 : i32
    %c0_i32_0 = arith.constant 0 : i32
    %c0_i32_1 = arith.constant 0 : i32
    return %c0_i32, %c0_i32_0 : i32, i32
  }
  func.func @transform_8(%arg0: i32) -> (i32, i32) {
    %c0_i32 = arith.constant 0 : i32
    %c0_i32_0 = arith.constant 0 : i32
    %c0_i32_1 = arith.constant 0 : i32
    return %c0_i32, %c0_i32_0 : i32, i32
  }
  func.func @transform_9(%arg0: i32) -> (i32, i32) {
    %c0_i32 = arith.constant 0 : i32
    %c0_i32_0 = arith.constant 0 : i32
    return %arg0, %c0_i32 : i32, i32
  }
}

</mosaic_0001>

<llo_original>
// kernel: macao_forward.1
$region0: #{macao_forward.1}
  #allocation0 [shape = 'u32[]', space=smem, size = 0x4, offset = 0x4, fixed_abs, tag = 'smem constant byte address 0x4 - core index']
  #allocation1 [shape = 'u32[144,128]{1,0:T(1,128)}', space=vmem, size = 0x12000, scoped, tag = 'internal scratch']
  %s0 = inlined_call_operand.vmem [shape: bf16[16,128], index: 0, kind: input, shape index: {}]
  %s1 = inlined_call_operand.vmem [shape: bf16[128,256], index: 1, kind: input, shape index: {}]
  %s2 = inlined_call_operand.hbm [shape: f32[1,256], index: 2, kind: input, shape index: {}]
  %s3 = inlined_call_operand.hbm [shape: bf16[256,128], index: 3, kind: input, shape index: {}]
  %s4 = inlined_call_operand.vmem [shape: f32[1,128], index: 4, kind: input, shape index: {}]
  %s5 = inlined_call_operand.hbm [shape: bf16[128,128], index: 5, kind: input, shape index: {}]
  %s6 = inlined_call_operand.hbm [shape: f32[1,128], index: 6, kind: input, shape index: {}]
  %s7 = inlined_call_operand.hbm [shape: bf16[128,128], index: 7, kind: input, shape index: {}]
  %s8 = inlined_call_operand.hbm [shape: f32[1,128], index: 8, kind: input, shape index: {}]
  %s9 = inlined_call_operand.vmem [shape: bf16[16,128], index: 9, kind: output, shape index: {}]
  %s10 = sld [smem:[#allocation0]]
  $region70: #{macao_forward.1} parent=0
    _
  %s12 = ssub.s32 1, %s10
  %s13 = scalar_select 0, %s12, %s10
  $region1: #{macao_forward.1} parent=0
    #allocation2 [shape = 'u8[1024]{0}', space=vmem, size = 0x400, scoped, tag = 'input window, operand 2, single buffered']
    #allocation3 [shape = 's32[1]{0}', space=sflag, size = 0x4, scoped, tag = 'scoped memory for macao_forward.1']
    #allocation4 [shape = 'u8[65536]{0}', space=vmem, size = 0x10000, scoped, tag = 'input window, operand 3, single buffered']
    #allocation5 [shape = 's32[1]{0}', space=sflag, size = 0x4, scoped, tag = 'scoped memory for macao_forward.1']
    #allocation6 [shape = 'u8[32768]{0}', space=vmem, size = 0x8000, scoped, tag = 'input window, operand 5, single buffered']
    #allocation7 [shape = 'u8[512]{0}', space=vmem, size = 0x400, scoped, tag = 'input window, operand 6, single buffered']
    #allocation8 [shape = 's32[1]{0}', space=sflag, size = 0x4, scoped, tag = 'scoped memory for macao_forward.1']
    #allocation9 [shape = 'u8[32768]{0}', space=vmem, size = 0x8000, scoped, tag = 'input window, operand 7, single buffered']
    #allocation10 [shape = 'u8[512]{0}', space=vmem, size = 0x400, scoped, tag = 'input window, operand 8, single buffered']
    #allocation11 [shape = 's32[1]{0}', space=sflag, size = 0x4, scoped, tag = 'scoped memory for macao_forward.1']
    %14 = vsyncpa [#allocation3], 0
    %15 = vsyncpa [#allocation5], 0
    %16 = vsyncpa [#allocation8], 0
    %17 = vsyncpa [#allocation11], 0
    // Predicated region
    $region2: #{macao_forward.1} parent=1 // pred_check
      _
    $region3: #{macao_forward.1} parent=1 // pred_check_branch
      %19 = sbr.rel (0) target = $region5
    $region4: #{macao_forward.1} parent=1 // pred_region
      _
    $region5: #{macao_forward.1} parent=1 // pred_fallthru
      _
    // Predicated region
    $region6: #{macao_forward.1} parent=1 // pred_check
      _
    $region7: #{macao_forward.1} parent=1 // pred_check_branch
      %21 = sbr.rel (0) target = $region9
    $region8: #{macao_forward.1} parent=1 // pred_region
      _
    $region9: #{macao_forward.1} parent=1 // pred_fallthru
      _
    // Predicated region
    $region10: #{macao_forward.1} parent=1 // pred_check
      _
    $region11: #{macao_forward.1} parent=1 // pred_check_branch
      %23 = sbr.rel (0) target = $region13
    $region12: #{macao_forward.1} parent=1 // pred_region
      %s25 = ssub.s32 32, 32
      %26 = vsyncadd [#allocation3], %s25
      %s28 = sshll.u32 [#allocation2], 4
      %s29 = int_to_ptr.vmem [resolvable:$true] %s28
      %31 = dma.hbm_to_vmem [thread:$0]  %s2, 32, %s29, [#allocation3]
    $region13: #{macao_forward.1} parent=1 // pred_fallthru
      _
    // Predicated region
    $region14: #{macao_forward.1} parent=1 // pred_check
      _
    $region15: #{macao_forward.1} parent=1 // pred_check_branch
      %33 = sbr.rel (0) target = $region17
    $region16: #{macao_forward.1} parent=1 // pred_region
      %s35 = ssub.s32 2048, 2048
      %36 = vsyncadd [#allocation5], %s35
      %s37 = sshll.u32 [#allocation4], 4
      %s38 = int_to_ptr.vmem [resolvable:$true] %s37
      %43 = dma.hbm_to_vmem [thread:$0]  %s3, 2048, %s38, [#allocation5], 64, 64, 4
    $region17: #{macao_forward.1} parent=1 // pred_fallthru
      _
    // Predicated region
    $region18: #{macao_forward.1} parent=1 // pred_check
      _
    $region19: #{macao_forward.1} parent=1 // pred_check_branch
      %45 = sbr.rel (0) target = $region21
    $region20: #{macao_forward.1} parent=1 // pred_region
      _
    $region21: #{macao_forward.1} parent=1 // pred_fallthru
      _
    // Predicated region
    $region22: #{macao_forward.1} parent=1 // pred_check
      _
    $region23: #{macao_forward.1} parent=1 // pred_check_branch
      %47 = sbr.rel (0) target = $region25
    $region24: #{macao_forward.1} parent=1 // pred_region
      %s49 = ssub.s32 1024, 1024
      %50 = vsyncadd [#allocation5], %s49
      %s51 = sshll.u32 [#allocation6], 4
      %s52 = int_to_ptr.vmem [resolvable:$true] %s51
      %57 = dma.hbm_to_vmem [thread:$0]  %s5, 1024, %s52, [#allocation5], 64, 64, 4
    $region25: #{macao_forward.1} parent=1 // pred_fallthru
      _
    // Predicated region
    $region26: #{macao_forward.1} parent=1 // pred_check
      _
    $region27: #{macao_forward.1} parent=1 // pred_check_branch
      %59 = sbr.rel (0) target = $region29
    $region28: #{macao_forward.1} parent=1 // pred_region
      %s61 = ssub.s32 16, 16
      %62 = vsyncadd [#allocation8], %s61
      %s64 = sshll.u32 [#allocation7], 4
      %s65 = int_to_ptr.vmem [resolvable:$true] %s64
      %67 = dma.hbm_to_vmem [thread:$0]  %s6, 16, %s65, [#allocation8]
    $region29: #{macao_forward.1} parent=1 // pred_fallthru
      _
    // Predicated region
    $region30: #{macao_forward.1} parent=1 // pred_check
      _
    $region31: #{macao_forward.1} parent=1 // pred_check_branch
      %69 = sbr.rel (0) target = $region33
    $region32: #{macao_forward.1} parent=1 // pred_region
      %s71 = ssub.s32 1024, 1024
      %72 = vsyncadd [#allocation8], %s71
      %s73 = sshll.u32 [#allocation9], 4
      %s74 = int_to_ptr.vmem [resolvable:$true] %s73
      %79 = dma.hbm_to_vmem [thread:$0]  %s7, 1024, %s74, [#allocation8], 64, 64, 4
    $region33: #{macao_forward.1} parent=1 // pred_fallthru
      _
    // Predicated region
    $region34: #{macao_forward.1} parent=1 // pred_check
      _
    $region35: #{macao_forward.1} parent=1 // pred_check_branch
      %81 = sbr.rel (0) target = $region37
    $region36: #{macao_forward.1} parent=1 // pred_region
      %s83 = ssub.s32 16, 16
      %84 = vsyncadd [#allocation11], %s83
      %s86 = sshll.u32 [#allocation10], 4
      %s87 = int_to_ptr.vmem [resolvable:$true] %s86
      %89 = dma.hbm_to_vmem [thread:$0]  %s8, 16, %s87, [#allocation11]
    $region37: #{macao_forward.1} parent=1 // pred_fallthru
      _
    // Predicated region
    $region38: #{macao_forward.1} parent=1 // pred_check
      _
    $region39: #{macao_forward.1} parent=1 // pred_check_branch
      %91 = sbr.rel (0) target = $region41
    $region40: #{macao_forward.1} parent=1 // pred_region
      %92 = dma.done [#allocation3], 32
    $region41: #{macao_forward.1} parent=1 // pred_fallthru
      _
    // Predicated region
    $region42: #{macao_forward.1} parent=1 // pred_check
      _
    $region43: #{macao_forward.1} parent=1 // pred_check_branch
      %94 = sbr.rel (0) target = $region45
    $region44: #{macao_forward.1} parent=1 // pred_region
      %95 = dma.done [#allocation5], 2048
    $region45: #{macao_forward.1} parent=1 // pred_fallthru
      _
    // Predicated region
    $region46: #{macao_forward.1} parent=1 // pred_check
      _
    $region47: #{macao_forward.1} parent=1 // pred_check_branch
      %97 = sbr.rel (0) target = $region49
    $region48: #{macao_forward.1} parent=1 // pred_region
      %98 = dma.done [#allocation5], 1024
    $region49: #{macao_forward.1} parent=1 // pred_fallthru
      _
    // Predicated region
    $region50: #{macao_forward.1} parent=1 // pred_check
      _
    $region51: #{macao_forward.1} parent=1 // pred_check_branch
      %100 = sbr.rel (0) target = $region53
    $region52: #{macao_forward.1} parent=1 // pred_region
      %101 = dma.done [#allocation8], 16
    $region53: #{macao_forward.1} parent=1 // pred_fallthru
      _
    // Predicated region
    $region54: #{macao_forward.1} parent=1 // pred_check
      _
    $region55: #{macao_forward.1} parent=1 // pred_check_branch
      %103 = sbr.rel (0) target = $region57
    $region56: #{macao_forward.1} parent=1 // pred_region
      %104 = dma.done [#allocation8], 1024
    $region57: #{macao_forward.1} parent=1 // pred_fallthru
      _
    // Predicated region
    $region58: #{macao_forward.1} parent=1 // pred_check
      _
    $region59: #{macao_forward.1} parent=1 // pred_check_branch
      %106 = sbr.rel (0) target = $region61
    $region60: #{macao_forward.1} parent=1 // pred_region
      %107 = dma.done [#allocation11], 16
    $region61: #{macao_forward.1} parent=1 // pred_fallthru
      _
    %v109 = vld [vmem:[%s1] sm:$0xff]
    %v110 = vld [vmem:[%s1 + $0x8] sm:$0xff]
    %v111 = vld [vmem:[%s1 + $0x10] sm:$0xff]
    %v112 = vld [vmem:[%s1 + $0x18] sm:$0xff]
    %v113 = vld [vmem:[%s1 + $0x20] sm:$0xff]
    %v114 = vld [vmem:[%s1 + $0x28] sm:$0xff]
    %v115 = vld [vmem:[%s1 + $0x30] sm:$0xff]
    %v116 = vld [vmem:[%s1 + $0x38] sm:$0xff]
    %v117 = vld [vmem:[%s1 + $0x40] sm:$0xff]
    %v118 = vld [vmem:[%s1 + $0x48] sm:$0xff]
    %v119 = vld [vmem:[%s1 + $0x50] sm:$0xff]
    %v120 = vld [vmem:[%s1 + $0x58] sm:$0xff]
    %v121 = vld [vmem:[%s1 + $0x60] sm:$0xff]
    %v122 = vld [vmem:[%s1 + $0x68] sm:$0xff]
    %v123 = vld [vmem:[%s1 + $0x70] sm:$0xff]
    %v124 = vld [vmem:[%s1 + $0x78] sm:$0xff]
    %v125 = vld [vmem:[#allocation2] sm:$0x3]
    %v126 = vld [vmem:[#allocation4] sm:$0xf]
    %v127 = vld [vmem:[#allocation4 + $0x4] sm:$0xf]
    %v128 = vld [vmem:[#allocation4 + $0x8] sm:$0xf]
    %v129 = vld [vmem:[#allocation4 + $0xc] sm:$0xf]
    %v130 = vld [vmem:[#allocation4 + $0x10] sm:$0xf]
    %v131 = vld [vmem:[#allocation4 + $0x14] sm:$0xf]
    %v132 = vld [vmem:[#allocation4 + $0x18] sm:$0xf]
    %v133 = vld [vmem:[#allocation4 + $0x1c] sm:$0xf]
    %v134 = vld [vmem:[#allocation4 + $0x20] sm:$0xf]
    %v135 = vld [vmem:[#allocation4 + $0x24] sm:$0xf]
    %v136 = vld [vmem:[#allocation4 + $0x28] sm:$0xf]
    %v137 = vld [vmem:[#allocation4 + $0x2c] sm:$0xf]
    %v138 = vld [vmem:[#allocation4 + $0x30] sm:$0xf]
    %v139 = vld [vmem:[#allocation4 + $0x34] sm:$0xf]
    %v140 = vld [vmem:[#allocation4 + $0x38] sm:$0xf]
    %v141 = vld [vmem:[#allocation4 + $0x3c] sm:$0xf]
    %v142 = vld [vmem:[#allocation4 + $0x40] sm:$0xf]
    %v143 = vld [vmem:[#allocation4 + $0x44] sm:$0xf]
    %v144 = vld [vmem:[#allocation4 + $0x48] sm:$0xf]
    %v145 = vld [vmem:[#allocation4 + $0x4c] sm:$0xf]
    %v146 = vld [vmem:[#allocation4 + $0x50] sm:$0xf]
    %v147 = vld [vmem:[#allocation4 + $0x54] sm:$0xf]
    %v148 = vld [vmem:[#allocation4 + $0x58] sm:$0xf]
    %v149 = vld [vmem:[#allocation4 + $0x5c] sm:$0xf]
    %v150 = vld [vmem:[#allocation4 + $0x60] sm:$0xf]
    %v151 = vld [vmem:[#allocation4 + $0x64] sm:$0xf]
    %v152 = vld [vmem:[#allocation4 + $0x68] sm:$0xf]
    %v153 = vld [vmem:[#allocation4 + $0x6c] sm:$0xf]
    %v154 = vld [vmem:[#allocation4 + $0x70] sm:$0xf]
    %v155 = vld [vmem:[#allocation4 + $0x74] sm:$0xf]
    %v156 = vld [vmem:[#allocation4 + $0x78] sm:$0xf]
    %v157 = vld [vmem:[#allocation4 + $0x7c] sm:$0xf]
    %v158 = vld [vmem:[%s4] sm:$0x1]
    %v159 = vld [vmem:[#allocation6] sm:$0xf]
    %v160 = vld [vmem:[#allocation6 + $0x4] sm:$0xf]
    %v161 = vld [vmem:[#allocation6 + $0x8] sm:$0xf]
    %v162 = vld [vmem:[#allocation6 + $0xc] sm:$0xf]
    %v163 = vld [vmem:[#allocation6 + $0x10] sm:$0xf]
    %v164 = vld [vmem:[#allocation6 + $0x14] sm:$0xf]
    %v165 = vld [vmem:[#allocation6 + $0x18] sm:$0xf]
    %v166 = vld [vmem:[#allocation6 + $0x1c] sm:$0xf]
    %v167 = vld [vmem:[#allocation6 + $0x20] sm:$0xf]
    %v168 = vld [vmem:[#allocation6 + $0x24] sm:$0xf]
    %v169 = vld [vmem:[#allocation6 + $0x28] sm:$0xf]
    %v170 = vld [vmem:[#allocation6 + $0x2c] sm:$0xf]
    %v171 = vld [vmem:[#allocation6 + $0x30] sm:$0xf]
    %v172 = vld [vmem:[#allocation6 + $0x34] sm:$0xf]
    %v173 = vld [vmem:[#allocation6 + $0x38] sm:$0xf]
    %v174 = vld [vmem:[#allocation6 + $0x3c] sm:$0xf]
    %v175 = vld [vmem:[#allocation7] sm:$0x1]
    %v176 = vld [vmem:[#allocation9] sm:$0xf]
    %v177 = vld [vmem:[#allocation9 + $0x4] sm:$0xf]
    %v178 = vld [vmem:[#allocation9 + $0x8] sm:$0xf]
    %v179 = vld [vmem:[#allocation9 + $0xc] sm:$0xf]
    %v180 = vld [vmem:[#allocation9 + $0x10] sm:$0xf]
    %v181 = vld [vmem:[#allocation9 + $0x14] sm:$0xf]
    %v182 = vld [vmem:[#allocation9 + $0x18] sm:$0xf]
    %v183 = vld [vmem:[#allocation9 + $0x1c] sm:$0xf]
    %v184 = vld [vmem:[#allocation9 + $0x20] sm:$0xf]
    %v185 = vld [vmem:[#allocation9 + $0x24] sm:$0xf]
    %v186 = vld [vmem:[#allocation9 + $0x28] sm:$0xf]
    %v187 = vld [vmem:[#allocation9 + $0x2c] sm:$0xf]
    %v188 = vld [vmem:[#allocation9 + $0x30] sm:$0xf]
    %v189 = vld [vmem:[#allocation9 + $0x34] sm:$0xf]
    %v190 = vld [vmem:[#allocation9 + $0x38] sm:$0xf]
    %v191 = vld [vmem:[#allocation9 + $0x3c] sm:$0xf]
    %v192 = vld [vmem:[#allocation10] sm:$0x1]
    %v193 = vld [vmem:[%s0] sm:$0xf]
    %v194 = vld [vmem:[%s0 + $0x4] sm:$0xf]
    %v196 = vlaneseq
    %v197 = vshrl.u32 %v196, 7
    %v198 = vsub.s32 0, %v197
    %v199 = vrot.slane %v125, %v198
    %v200 = vlaneseq
    %v201 = vshrl.u32 %v200, 7
    %v202 = vsub.s32 1, %v201
    %v203 = vrot.slane %v125, %v202
    %v208 = vunpack.c.l.b16 %v193
    %v209 = vunpack.c.l.b16 %v194
    %v210 = vpack.c.b16 %v209, %v208
    %v228 = vunpack.c.l.b16 %v109
    %v229 = vunpack.c.h.b16 %v109
    %v230 = vunpack.c.l.b16 %v110
    %v231 = vunpack.c.h.b16 %v110
    %v232 = vunpack.c.l.b16 %v111
    %v233 = vunpack.c.h.b16 %v111
    %v234 = vunpack.c.l.b16 %v112
    %v235 = vunpack.c.h.b16 %v112
    %v236 = vunpack.c.l.b16 %v113
    %v237 = vunpack.c.h.b16 %v113
    %v238 = vunpack.c.l.b16 %v114
    %v239 = vunpack.c.h.b16 %v114
    %v240 = vunpack.c.l.b16 %v115
    %v241 = vunpack.c.h.b16 %v115
    %v242 = vunpack.c.l.b16 %v116
    %v243 = vunpack.c.h.b16 %v116
    %v244 = vunpack.c.l.b16 %v117
    %v245 = vunpack.c.h.b16 %v117
    %v246 = vunpack.c.l.b16 %v118
    %v247 = vunpack.c.h.b16 %v118
    %v248 = vunpack.c.l.b16 %v119
    %v249 = vunpack.c.h.b16 %v119
    %v250 = vunpack.c.l.b16 %v120
    %v251 = vunpack.c.h.b16 %v120
    %v252 = vunpack.c.l.b16 %v121
    %v253 = vunpack.c.h.b16 %v121
    %v254 = vunpack.c.l.b16 %v122
    %v255 = vunpack.c.h.b16 %v122
    %v256 = vunpack.c.l.b16 %v123
    %v257 = vunpack.c.h.b16 %v123
    %v258 = vunpack.c.l.b16 %v124
    %v259 = vunpack.c.h.b16 %v124
    %v260 = vpack.c.b16 %v230, %v228
    %v261 = vpack.c.b16 %v231, %v229
    %v262 = vpack.c.b16 %v234, %v232
    %v263 = vpack.c.b16 %v235, %v233
    %v264 = vpack.c.b16 %v238, %v236
    %v265 = vpack.c.b16 %v239, %v237
    %v266 = vpack.c.b16 %v242, %v240
    %v267 = vpack.c.b16 %v243, %v241
    %v268 = vpack.c.b16 %v246, %v244
    %v269 = vpack.c.b16 %v247, %v245
    %v270 = vpack.c.b16 %v250, %v248
    %v271 = vpack.c.b16 %v251, %v249
    %v272 = vpack.c.b16 %v254, %v252
    %v273 = vpack.c.b16 %v255, %v253
    %v274 = vpack.c.b16 %v258, %v256
    %v275 = vpack.c.b16 %v259, %v257
    %292 = vmatprep.subr.bf16.mxu0 %v275
    %293 = vmatpush1.bf16.msra.mxu0 %v274
    %294 = vmatprep.subr.bf16.mxu0 %v273
    %295 = vmatpush1.bf16.msra.mxu0 %v272
    %296 = vmatprep.subr.bf16.mxu0 %v271
    %297 = vmatpush1.bf16.msra.mxu0 %v270
    %298 = vmatprep.subr.bf16.mxu0 %v269
    %299 = vmatpush1.bf16.msra.mxu0 %v268
    %300 = vmatprep.subr.bf16.mxu0 %v267
    %301 = vmatpush1.bf16.msra.mxu0 %v266
    %302 = vmatprep.subr.bf16.mxu0 %v265
    %303 = vmatpush1.bf16.msra.mxu0 %v264
    %304 = vmatprep.subr.bf16.mxu0 %v263
    %305 = vmatpush1.bf16.msra.mxu0 %v262
    %306 = vmatprep.subr.bf16.mxu0 %v261
    %307 = vmatpush1.bf16.msra.mxu0 %v260
    %308 = vmatprep.subr.bf16.mxu0 0
    %309 = vmatpush2.bf16.msra.mxu0 0
    %310 = vmatprep.subr.bf16.mxu0 0
    %311 = vmatpush2.bf16.msra.mxu0 0
    %312 = vmatprep.subr.bf16.mxu0 0
    %313 = vmatpush2.bf16.msra.mxu0 0
    %314 = vmatprep.subr.bf16.mxu0 0
    %315 = vmatpush2.bf16.msra.mxu0 0
    %316 = vmatprep.subr.bf16.mxu0 0
    %317 = vmatpush2.bf16.msra.mxu0 0
    %318 = vmatprep.subr.bf16.mxu0 0
    %319 = vmatpush2.bf16.msra.mxu0 0
    %320 = vmatprep.subr.bf16.mxu0 0
    %321 = vmatpush2.bf16.msra.mxu0 0
    %322 = vmatprep.subr.bf16.mxu0 0
    %323 = vmatpush2.bf16.msra.mxu0 0
    %324 = vmatprep.mubr.bf16.mxu0 0
    %325 = vmatmul.mubr.bf16.gmra.mxu0 %v210
    %v326 = vpop.f32.mrf.mxu0
    %v327 = vadd.f32 %v199, %v326
    %v328 = vpop.f32.mrf.mxu0
    %v329 = vadd.f32 %v203, %v328
    %v330 = vpop.f32.mrf.mxu0
    %v331 = vadd.f32 %v199, %v330
    %v332 = vpop.f32.mrf.mxu0
    %v333 = vadd.f32 %v203, %v332
    %334 = vdwg.mxu0
    %v335 = vmax.f32 %v327, 0.0
    %v336 = vmax.f32 %v329, 0.0
    %v337 = vmax.f32 %v331, 0.0
    %v338 = vmax.f32 %v333, 0.0
    %v339 = vpack.c.bf16 %v337, %v335
    %v340 = vpack.c.bf16 %v338, %v336
    %v342 = vlaneseq
    %v343 = vshrl.u32 %v342, 7
    %v344 = vsub.s32 0, %v343
    %v345 = vrot.slane %v158, %v344
    %v379 = vunpack.c.l.b16 %v126
    %v380 = vunpack.c.l.b16 %v127
    %v381 = vunpack.c.l.b16 %v128
    %v382 = vunpack.c.l.b16 %v129
    %v383 = vunpack.c.l.b16 %v130
    %v384 = vunpack.c.l.b16 %v131
    %v385 = vunpack.c.l.b16 %v132
    %v386 = vunpack.c.l.b16 %v133
    %v387 = vunpack.c.l.b16 %v134
    %v388 = vunpack.c.l.b16 %v135
    %v389 = vunpack.c.l.b16 %v136
    %v390 = vunpack.c.l.b16 %v137
    %v391 = vunpack.c.l.b16 %v138
    %v392 = vunpack.c.l.b16 %v139
    %v393 = vunpack.c.l.b16 %v140
    %v394 = vunpack.c.l.b16 %v141
    %v395 = vunpack.c.l.b16 %v142
    %v396 = vunpack.c.l.b16 %v143
    %v397 = vunpack.c.l.b16 %v144
    %v398 = vunpack.c.l.b16 %v145
    %v399 = vunpack.c.l.b16 %v146
    %v400 = vunpack.c.l.b16 %v147
    %v401 = vunpack.c.l.b16 %v148
    %v402 = vunpack.c.l.b16 %v149
    %v403 = vunpack.c.l.b16 %v150
    %v404 = vunpack.c.l.b16 %v151
    %v405 = vunpack.c.l.b16 %v152
    %v406 = vunpack.c.l.b16 %v153
    %v407 = vunpack.c.l.b16 %v154
    %v408 = vunpack.c.l.b16 %v155
    %v409 = vunpack.c.l.b16 %v156
    %v410 = vunpack.c.l.b16 %v157
    %v411 = vpack.c.b16 %v380, %v379
    %v412 = vpack.c.b16 %v382, %v381
    %v413 = vpack.c.b16 %v384, %v383
    %v414 = vpack.c.b16 %v386, %v385
    %v415 = vpack.c.b16 %v388, %v387
    %v416 = vpack.c.b16 %v390, %v389
    %v417 = vpack.c.b16 %v392, %v391
    %v418 = vpack.c.b16 %v394, %v393
    %v419 = vpack.c.b16 %v396, %v395
    %v420 = vpack.c.b16 %v398, %v397
    %v421 = vpack.c.b16 %v400, %v399
    %v422 = vpack.c.b16 %v402, %v401
    %v423 = vpack.c.b16 %v404, %v403
    %v424 = vpack.c.b16 %v406, %v405
    %v425 = vpack.c.b16 %v408, %v407
    %v426 = vpack.c.b16 %v410, %v409
    %443 = vmatprep.subr.bf16.mxu0 0
    %444 = vmatpush1.bf16.msra.mxu0 %v418
    %445 = vmatprep.subr.bf16.mxu0 0
    %446 = vmatpush1.bf16.msra.mxu0 %v417
    %447 = vmatprep.subr.bf16.mxu0 0
    %448 = vmatpush1.bf16.msra.mxu0 %v416
    %449 = vmatprep.subr.bf16.mxu0 0
    %450 = vmatpush1.bf16.msra.mxu0 %v415
    %451 = vmatprep.subr.bf16.mxu0 0
    %452 = vmatpush1.bf16.msra.mxu0 %v414
    %453 = vmatprep.subr.bf16.mxu0 0
    %454 = vmatpush1.bf16.msra.mxu0 %v413
    %455 = vmatprep.subr.bf16.mxu0 0
    %456 = vmatpush1.bf16.msra.mxu0 %v412
    %457 = vmatprep.subr.bf16.mxu0 0
    %458 = vmatpush1.bf16.msra.mxu0 %v411
    %459 = vmatprep.subr.bf16.mxu0 0
    %460 = vmatpush2.bf16.msra.mxu0 %v426
    %461 = vmatprep.subr.bf16.mxu0 0
    %462 = vmatpush2.bf16.msra.mxu0 %v425
    %463 = vmatprep.subr.bf16.mxu0 0
    %464 = vmatpush2.bf16.msra.mxu0 %v424
    %465 = vmatprep.subr.bf16.mxu0 0
    %466 = vmatpush2.bf16.msra.mxu0 %v423
    %467 = vmatprep.subr.bf16.mxu0 0
    %468 = vmatpush2.bf16.msra.mxu0 %v422
    %469 = vmatprep.subr.bf16.mxu0 0
    %470 = vmatpush2.bf16.msra.mxu0 %v421
    %471 = vmatprep.subr.bf16.mxu0 0
    %472 = vmatpush2.bf16.msra.mxu0 %v420
    %473 = vmatprep.subr.bf16.mxu0 0
    %474 = vmatpush2.bf16.msra.mxu0 %v419
    %475 = vmatprep.mubr.bf16.mxu0 %v340
    %476 = vmatmul.mubr.bf16.gmra.mxu0 %v339
    %v477 = vpop.f32.mrf.mxu0
    %v478 = vadd.f32 %v345, %v477
    %v479 = vpop.f32.mrf.mxu0
    %v480 = vpop.f32.mrf.mxu0
    %v481 = vadd.f32 %v345, %v480
    %v482 = vpop.f32.mrf.mxu0
    %483 = vdwg.mxu0
    %v484 = vmax.f32 %v478, 0.0
    %v485 = vmax.f32 %v481, 0.0
    %v486 = vpack.c.bf16 %v485, %v484
    %v488 = vlaneseq
    %v489 = vshrl.u32 %v488, 7
    %v490 = vsub.s32 0, %v489
    %v491 = vrot.slane %v175, %v490
    %v509 = vunpack.c.l.b16 %v159
    %v510 = vunpack.c.l.b16 %v160
    %v511 = vunpack.c.l.b16 %v161
    %v512 = vunpack.c.l.b16 %v162
    %v513 = vunpack.c.l.b16 %v163
    %v514 = vunpack.c.l.b16 %v164
    %v515 = vunpack.c.l.b16 %v165
    %v516 = vunpack.c.l.b16 %v166
    %v517 = vunpack.c.l.b16 %v167
    %v518 = vunpack.c.l.b16 %v168
    %v519 = vunpack.c.l.b16 %v169
    %v520 = vunpack.c.l.b16 %v170
    %v521 = vunpack.c.l.b16 %v171
    %v522 = vunpack.c.l.b16 %v172
    %v523 = vunpack.c.l.b16 %v173
    %v524 = vunpack.c.l.b16 %v174
    %v525 = vpack.c.b16 %v510, %v509
    %v526 = vpack.c.b16 %v512, %v511
    %v527 = vpack.c.b16 %v514, %v513
    %v528 = vpack.c.b16 %v516, %v515
    %v529 = vpack.c.b16 %v518, %v517
    %v530 = vpack.c.b16 %v520, %v519
    %v531 = vpack.c.b16 %v522, %v521
    %v532 = vpack.c.b16 %v524, %v523
    %541 = vmatprep.subr.bf16.mxu0 0
    %542 = vmatpush1.bf16.msra.mxu0 %v532
    %543 = vmatprep.subr.bf16.mxu0 0
    %544 = vmatpush1.bf16.msra.mxu0 %v531
    %545 = vmatprep.subr.bf16.mxu0 0
    %546 = vmatpush1.bf16.msra.mxu0 %v530
    %547 = vmatprep.subr.bf16.mxu0 0
    %548 = vmatpush1.bf16.msra.mxu0 %v529
    %549 = vmatprep.subr.bf16.mxu0 0
    %550 = vmatpush1.bf16.msra.mxu0 %v528
    %551 = vmatprep.subr.bf16.mxu0 0
    %552 = vmatpush1.bf16.msra.mxu0 %v527
    %553 = vmatprep.subr.bf16.mxu0 0
    %554 = vmatpush1.bf16.msra.mxu0 %v526
    %555 = vmatprep.subr.bf16.mxu0 0
    %556 = vmatpush1.bf16.msra.mxu0 %v525
    %557 = vmatprep.subr.bf16.mxu0 0
    %558 = vmatpush2.bf16.msra.mxu0 0
    %559 = vmatprep.subr.bf16.mxu0 0
    %560 = vmatpush2.bf16.msra.mxu0 0
    %561 = vmatprep.subr.bf16.mxu0 0
    %562 = vmatpush2.bf16.msra.mxu0 0
    %563 = vmatprep.subr.bf16.mxu0 0
    %564 = vmatpush2.bf16.msra.mxu0 0
    %565 = vmatprep.subr.bf16.mxu0 0
    %566 = vmatpush2.bf16.msra.mxu0 0
    %567 = vmatprep.subr.bf16.mxu0 0
    %568 = vmatpush2.bf16.msra.mxu0 0
    %569 = vmatprep.subr.bf16.mxu0 0
    %570 = vmatpush2.bf16.msra.mxu0 0
    %571 = vmatprep.subr.bf16.mxu0 0
    %572 = vmatpush2.bf16.msra.mxu0 0
    %573 = vmatprep.mubr.bf16.mxu0 0
    %574 = vmatmul.mubr.bf16.gmra.mxu0 %v486
    %v575 = vpop.f32.mrf.mxu0
    %v576 = vadd.f32 %v491, %v575
    %v577 = vpop.f32.mrf.mxu0
    %v578 = vpop.f32.mrf.mxu0
    %v579 = vadd.f32 %v491, %v578
    %v580 = vpop.f32.mrf.mxu0
    %581 = vdwg.mxu0
    %v582 = vmax.f32 %v576, 0.0
    %v583 = vmax.f32 %v579, 0.0
    %v584 = vpack.c.bf16 %v583, %v582
    %v586 = vlaneseq
    %v587 = vshrl.u32 %v586, 7
    %v588 = vsub.s32 0, %v587
    %v589 = vrot.slane %v192, %v588
    %v607 = vunpack.c.l.b16 %v176
    %v608 = vunpack.c.l.b16 %v177
    %v609 = vunpack.c.l.b16 %v178
    %v610 = vunpack.c.l.b16 %v179
    %v611 = vunpack.c.l.b16 %v180
    %v612 = vunpack.c.l.b16 %v181
    %v613 = vunpack.c.l.b16 %v182
    %v614 = vunpack.c.l.b16 %v183
    %v615 = vunpack.c.l.b16 %v184
    %v616 = vunpack.c.l.b16 %v185
    %v617 = vunpack.c.l.b16 %v186
    %v618 = vunpack.c.l.b16 %v187
    %v619 = vunpack.c.l.b16 %v188
    %v620 = vunpack.c.l.b16 %v189
    %v621 = vunpack.c.l.b16 %v190
    %v622 = vunpack.c.l.b16 %v191
    %v623 = vpack.c.b16 %v608, %v607
    %v624 = vpack.c.b16 %v610, %v609
    %v625 = vpack.c.b16 %v612, %v611
    %v626 = vpack.c.b16 %v614, %v613
    %v627 = vpack.c.b16 %v616, %v615
    %v628 = vpack.c.b16 %v618, %v617
    %v629 = vpack.c.b16 %v620, %v619
    %v630 = vpack.c.b16 %v622, %v621
    %639 = vmatprep.subr.bf16.mxu0 0
    %640 = vmatpush1.bf16.msra.mxu0 %v630
    %641 = vmatprep.subr.bf16.mxu0 0
    %642 = vmatpush1.bf16.msra.mxu0 %v629
    %643 = vmatprep.subr.bf16.mxu0 0
    %644 = vmatpush1.bf16.msra.mxu0 %v628
    %645 = vmatprep.subr.bf16.mxu0 0
    %646 = vmatpush1.bf16.msra.mxu0 %v627
    %647 = vmatprep.subr.bf16.mxu0 0
    %648 = vmatpush1.bf16.msra.mxu0 %v626
    %649 = vmatprep.subr.bf16.mxu0 0
    %650 = vmatpush1.bf16.msra.mxu0 %v625
    %651 = vmatprep.subr.bf16.mxu0 0
    %652 = vmatpush1.bf16.msra.mxu0 %v624
    %653 = vmatprep.subr.bf16.mxu0 0
    %654 = vmatpush1.bf16.msra.mxu0 %v623
    %655 = vmatprep.subr.bf16.mxu0 0
    %656 = vmatpush2.bf16.msra.mxu0 0
    %657 = vmatprep.subr.bf16.mxu0 0
    %658 = vmatpush2.bf16.msra.mxu0 0
    %659 = vmatprep.subr.bf16.mxu0 0
    %660 = vmatpush2.bf16.msra.mxu0 0
    %661 = vmatprep.subr.bf16.mxu0 0
    %662 = vmatpush2.bf16.msra.mxu0 0
    %663 = vmatprep.subr.bf16.mxu0 0
    %664 = vmatpush2.bf16.msra.mxu0 0
    %665 = vmatprep.subr.bf16.mxu0 0
    %666 = vmatpush2.bf16.msra.mxu0 0
    %667 = vmatprep.subr.bf16.mxu0 0
    %668 = vmatpush2.bf16.msra.mxu0 0
    %669 = vmatprep.subr.bf16.mxu0 0
    %670 = vmatpush2.bf16.msra.mxu0 0
    %671 = vmatprep.mubr.bf16.mxu0 0
    %672 = vmatmul.mubr.bf16.gmra.mxu0 %v584
    %v673 = vpop.f32.mrf.mxu0
    %v674 = vadd.f32 %v589, %v673
    %v675 = vpop.f32.mrf.mxu0
    %v676 = vpop.f32.mrf.mxu0
    %v677 = vadd.f32 %v589, %v676
    %v678 = vpop.f32.mrf.mxu0
    %679 = vdwg.mxu0
    %v680 = vpack.c.bf16 %v677, %v674
    %v682 = vunpack.c.l.b16 %v680
    %v683 = vunpack.c.h.b16 %v680
    %v684 = vpack.c.b16 %v682, %v682
    %v685 = vpack.c.b16 %v683, %v683
    %688 = vst [vmem:[%s9] sm:$0xf] %v684
    %689 = vst [vmem:[%s9 + $0x4] sm:$0xf] %v685
    // Predicated region
    $region62: #{macao_forward.1} parent=1 // pred_check
      _
    $region63: #{macao_forward.1} parent=1 // pred_check_branch
      %691 = sbr.rel (0) target = $region65
    $region64: #{macao_forward.1} parent=1 // pred_region
      _
    $region65: #{macao_forward.1} parent=1 // pred_fallthru
      _
    // Predicated region
    $region66: #{macao_forward.1} parent=1 // pred_check
      _
    $region67: #{macao_forward.1} parent=1 // pred_check_branch
      %693 = sbr.rel (0) target = $region69
    $region68: #{macao_forward.1} parent=1 // pred_region
      _
    $region69: #{macao_forward.1} parent=1 // pred_fallthru
      _
    %694 = vsyncpa [#allocation3], 1
    %695 = vsyncpa [#allocation5], 1
    %696 = vsyncpa [#allocation8], 1
    %697 = vsyncpa [#allocation11], 1

</llo_original>
